<compile_context>
chip_gen: v7x
topology: tpu7x:2x2x1
jax: 0.10.0
libtpu: 0.0.40
codegen_flags: <defaults>
</compile_context>

<pallas_src>
import jax
import jax.numpy as jnp
from jax.experimental import pallas as pl
from jax.experimental.pallas import tpu as pltpu


def _node_choice_kernel(x_ref, w1_ref, b1_ref, w2p_ref, c_ref, out_ref):
    x = x_ref[...]                                              # [T, d] bf16
    # ffn[0]: Linear(d, 4d) — MXU, f32 accumulation.
    h = jnp.dot(x, w1_ref[...], preferred_element_type=jnp.float32) + b1_ref[...]
    # ffn[1]: SiLU — logistic lands on the EUP slot, multiply on the VPU.
    h = h * jax.nn.sigmoid(h)
    # ffn[2] + concat + proj, folded:  silu(h) @ (W2 @ Wp[:d])  + c
    #   -> VPU multiply + lane (XLU) reduction; no second MXU pass needed.
    logits = jnp.sum(h * w2p_ref[...], axis=-1, keepdims=True) + c_ref[...]
    out_ref[...] = logits.astype(out_ref.dtype)


def node_choice_agent(node_repr, brick_emb, params, *,
                      tile_n=1024, compute_dtype=jnp.bfloat16):
    """node_repr: [N, d], brick_emb: [d]  ->  logits [N, 1] float32."""
    N, d = node_repr.shape
    w1, b1, w2, b2, wp, bp = (params["w1"], params["b1"], params["w2"],
                              params["b2"], params["wp"], params["bp"])

    # bf16 MXU operands: halves HBM/VMEM bytes, 2x+ MXU throughput.
    x = node_repr.astype(compute_dtype)
    w1c = w1.astype(compute_dtype)
    b1r = b1.astype(jnp.float32).reshape(1, 4 * d)

    # Fold Linear(4d, d) into the 1-wide projection (f32 precompute, done once).
    wph = wp[:d, 0].astype(jnp.float32)                         # node half  [d]
    wpb = wp[d:, 0].astype(jnp.float32)                         # brick half [d]
    w2p = (w2.astype(jnp.float32) @ wph).reshape(1, 4 * d)      # W2 @ Wp[:d]
    # Row-constant terms (second-linear bias, brick half, projection bias).
    c = (jnp.dot(b2.astype(jnp.float32), wph)
         + jnp.dot(brick_emb.astype(jnp.float32), wpb)
         + bp.astype(jnp.float32).reshape(())).reshape(1, 1)

    # Row tile: multiple of 8 sublanes; a full-dim block (tile_n == N) is
    # always layout-legal.  Ragged last tile is masked by Pallas (rows are
    # independent, so this is correct).
    tile_n = min(tile_n, N)
    if tile_n < N:
        tile_n = max(8, (tile_n // 8) * 8)
    grid = (pl.cdiv(N, tile_n),)

    const = lambda shape: pl.BlockSpec(shape, lambda i: (0,) * len(shape))

    return pl.pallas_call(
        _node_choice_kernel,
        out_shape=jax.ShapeDtypeStruct((N, 1), jnp.float32),
        grid=grid,
        in_specs=[
            pl.BlockSpec((tile_n, d), lambda i: (i, 0)),     # x: pipelined over N
            const((d, 4 * d)),                               # W1 (VMEM-resident)
            const((1, 4 * d)),                               # b1
            const((1, 4 * d)),                               # W2 @ Wp[:d]
            const((1, 1)),                                   # row-constant scalar
        ],
        out_specs=pl.BlockSpec((tile_n, 1), lambda i: (i, 0)),
        compiler_params=pltpu.CompilerParams(
            dimension_semantics=("parallel",),    # v7x: shard row tiles over 2 TCs
            vmem_limit_bytes=64 * 1024 * 1024,
        ),
    )(x, w1c, b1r, w2p, c)


def init_params(key, dim):
    """Deterministic init mimicking PyTorch Linear default (U[-1/sqrt(fan_in), ..])."""
    ks = jax.random.split(key, 6)

    def lin(kw, kb, fan_in, fan_out):
        bound = 1.0 / jnp.sqrt(fan_in)
        w = jax.random.uniform(kw, (fan_in, fan_out), jnp.float32, -bound, bound)
        b = jax.random.uniform(kb, (fan_out,), jnp.float32, -bound, bound)
        return w, b

    w1, b1 = lin(ks[0], ks[1], dim, 4 * dim)
    w2, b2 = lin(ks[2], ks[3], 4 * dim, dim)
    wp, bp = lin(ks[4], ks[5], 2 * dim, 1)
    return {"w1": w1, "b1": b1, "w2": w2, "b2": b2, "wp": wp, "bp": bp}


def _reference_f32(node_repr, brick_emb, p):
    """Straight port of the PyTorch module in f32."""
    h = node_repr @ p["w1"] + p["b1"]
    h = h * jax.nn.sigmoid(h)
    h = h @ p["w2"] + p["b2"]
    cat = jnp.concatenate(
        [h, jnp.broadcast_to(brick_emb[None, :], h.shape)], axis=1)
    return cat @ p["wp"] + p["bp"]


def _reference_matched(node_repr, brick_emb, p, compute_dtype):
    """Same math as the kernel (bf16 MXU, f32 acc, W2/concat folded into proj)."""
    d = node_repr.shape[1]
    h = jnp.dot(node_repr.astype(compute_dtype), p["w1"].astype(compute_dtype),
                preferred_element_type=jnp.float32) + p["b1"]
    h = h * jax.nn.sigmoid(h)
    wph = p["wp"][:d, 0]
    w2p = p["w2"] @ wph
    node_term = jnp.sum(h * w2p[None, :], axis=-1, keepdims=True)
    c = p["b2"] @ wph + brick_emb @ p["wp"][d:, 0] + p["bp"][0]
    return node_term + c


if __name__ == "__main__":
    # Small but lane-aligned shapes (d multiple of 128; N multiple of 8).
    N, d = 64, 128
    key = jax.random.PRNGKey(0)
    k_x, k_b, k_p = jax.random.split(key, 3)

    node_repr = jax.random.normal(k_x, (N, d), jnp.float32)
    brick_emb = jax.random.normal(k_b, (d,), jnp.float32)
    params = init_params(k_p, d)

    # tile_n=16 exercises the pipelined multi-tile path (grid of 4).
    out = node_choice_agent(node_repr, brick_emb, params, tile_n=16)
    out = jax.block_until_ready(out)
    assert out.shape == (N, 1)

    # Default tile (clamped to N) exercises the single-block path too.
    out_single = jax.block_until_ready(
        node_choice_agent(node_repr, brick_emb, params))
    assert out_single.shape == (N, 1)

    ref_matched = _reference_matched(node_repr, brick_emb, params, jnp.bfloat16)
    ref_f32 = _reference_f32(node_repr, brick_emb, params)
    assert jnp.allclose(out, ref_matched, atol=5e-3, rtol=5e-3), \
        "mismatch vs matched (bf16, folded) reference"
    assert jnp.allclose(out, ref_f32, atol=1e-1, rtol=1e-1), \
        "mismatch vs f32 module reference"
    assert jnp.allclose(out, out_single, atol=1e-6, rtol=1e-6), \
        "tile-size dependence detected"
    print("KERNEL_OK")
</pallas_src>

<mosaic_0001>
module attributes {stable_mosaic.version = 11 : i64} {
  func.func @_node_choice_kernel(%arg0: i32, %arg1: memref<16x128xbf16, #tpu.memory_space<vmem>>, %arg2: memref<128x512xbf16, #tpu.memory_space<vmem>>, %arg3: memref<1x512xf32, #tpu.memory_space<vmem>>, %arg4: memref<1x512xf32, #tpu.memory_space<vmem>>, %arg5: memref<1x1xf32, #tpu.memory_space<vmem>>, %arg6: memref<16x1xf32, #tpu.memory_space<vmem>>) attributes {dimension_semantics = [#tpu.dimension_semantics<parallel>], iteration_bounds = array<i64: 4>, scalar_prefetch = 0 : i64, scratch_operands = 0 : i64, tpu.core_type = #tpu.core_type<tc>, window_params = [{transform_indices = @transform_0, window_bounds = array<i64: 16, 128>}, {pipeline_mode = #tpu.pipeline_mode<synchronous>, transform_indices = @transform_1, window_bounds = array<i64: 128, 512>}, {pipeline_mode = #tpu.pipeline_mode<synchronous>, transform_indices = @transform_2, window_bounds = array<i64: 1, 512>}, {pipeline_mode = #tpu.pipeline_mode<synchronous>, transform_indices = @transform_3, window_bounds = array<i64: 1, 512>}, {pipeline_mode = #tpu.pipeline_mode<synchronous>, transform_indices = @transform_4, window_bounds = array<i64: 1, 1>}, {transform_indices = @transform_5, window_bounds = array<i64: 16, 1>}]} {
    %c0 = arith.constant 0 : index
    %c0_0 = arith.constant 0 : index
    %0 = vector.load %arg1[%c0, %c0_0] : memref<16x128xbf16, #tpu.memory_space<vmem>>, vector<16x128xbf16>
    %c0_1 = arith.constant 0 : index
    %c0_2 = arith.constant 0 : index
    %1 = vector.load %arg2[%c0_1, %c0_2] : memref<128x512xbf16, #tpu.memory_space<vmem>>, vector<128x512xbf16>
    %cst = arith.constant dense<0.000000e+00> : vector<16x512xf32>
    %2 = tpu.matmul %0, %1, %cst {dimension_numbers = #tpu.dot_dimension_numbers<[1], [0], [0], [1], [0, 0, 1, 1], [], []>} : vector<16x128xbf16>, vector<128x512xbf16>, vector<16x512xf32> -> vector<16x512xf32>
    %c0_3 = arith.constant 0 : index
    %c0_4 = arith.constant 0 : index
    %3 = vector.load %arg3[%c0_3, %c0_4] : memref<1x512xf32, #tpu.memory_space<vmem>>, vector<1x512xf32>
    %4 = vector.broadcast %3 : vector<1x512xf32> to vector<16x512xf32>
    %5 = arith.addf %2, %4 : vector<16x512xf32>
    %6 = arith.negf %5 : vector<16x512xf32>
    %7 = math.exp %6 : vector<16x512xf32>
    %cst_5 = arith.constant 1.000000e+00 : f32
    %8 = vector.broadcast %cst_5 : f32 to vector<16x512xf32>
    %9 = arith.addf %8, %7 : vector<16x512xf32>
    %10 = arith.divf %8, %9 : vector<16x512xf32>
    %11 = arith.mulf %5, %10 : vector<16x512xf32>
    %c0_6 = arith.constant 0 : index
    %c0_7 = arith.constant 0 : index
    %12 = vector.load %arg4[%c0_6, %c0_7] : memref<1x512xf32, #tpu.memory_space<vmem>>, vector<1x512xf32>
    %13 = vector.broadcast %12 : vector<1x512xf32> to vector<16x512xf32>
    %14 = arith.mulf %11, %13 : vector<16x512xf32>
    %cst_8 = arith.constant dense<0.000000e+00> : vector<16xf32>
    %15 = vector.multi_reduction <add>, %14, %cst_8 [1] : vector<16x512xf32> to vector<16xf32>
    %16 = vector.shape_cast %15 : vector<16xf32> to vector<16x1xf32>
    %c0_9 = arith.constant 0 : index
    %c0_10 = arith.constant 0 : index
    %17 = vector.load %arg5[%c0_9, %c0_10] : memref<1x1xf32, #tpu.memory_space<vmem>>, vector<1x1xf32>
    %18 = vector.broadcast %17 : vector<1x1xf32> to vector<16x1xf32>
    %19 = arith.addf %16, %18 : vector<16x1xf32>
    %c0_11 = arith.constant 0 : index
    %c0_12 = arith.constant 0 : index
    %20 = vector.load %arg6[%c0_11, %c0_12] : memref<16x1xf32, #tpu.memory_space<vmem>>, vector<16x1xf32>
    tpu.vector_store %arg6[%c0_11, %c0_12], %19 {strides = array<i32>} : memref<16x1xf32, #tpu.memory_space<vmem>>, vector<16x1xf32>,
    return
  }
  func.func @transform_0(%arg0: i32) -> (i32, i32) {
    %c0_i32 = arith.constant 0 : i32
    %c0_i32_0 = arith.constant 0 : i32
    return %arg0, %c0_i32 : i32, i32
  }
  func.func @transform_1(%arg0: i32) -> (i32, i32) {
    %c0_i32 = arith.constant 0 : i32
    %c0_i32_0 = arith.constant 0 : i32
    %c0_i32_1 = arith.constant 0 : i32
    return %c0_i32, %c0_i32_0 : i32, i32
  }
  func.func @transform_2(%arg0: i32) -> (i32, i32) {
    %c0_i32 = arith.constant 0 : i32
    %c0_i32_0 = arith.constant 0 : i32
    %c0_i32_1 = arith.constant 0 : i32
    return %c0_i32, %c0_i32_0 : i32, i32
  }
  func.func @transform_3(%arg0: i32) -> (i32, i32) {
    %c0_i32 = arith.constant 0 : i32
    %c0_i32_0 = arith.constant 0 : i32
    %c0_i32_1 = arith.constant 0 : i32
    return %c0_i32, %c0_i32_0 : i32, i32
  }
  func.func @transform_4(%arg0: i32) -> (i32, i32) {
    %c0_i32 = arith.constant 0 : i32
    %c0_i32_0 = arith.constant 0 : i32
    %c0_i32_1 = arith.constant 0 : i32
    return %c0_i32, %c0_i32_0 : i32, i32
  }
  func.func @transform_5(%arg0: i32) -> (i32, i32) {
    %c0_i32 = arith.constant 0 : i32
    %c0_i32_0 = arith.constant 0 : i32
    return %arg0, %c0_i32 : i32, i32
  }
}

</mosaic_0001>

<llo_original>
// kernel: tpu_custom_call.1
$region0: #{tpu_custom_call.1}
  #allocation0 [shape = 'u32[]', space=smem, size = 0x4, offset = 0x4, fixed_abs, tag = 'smem constant byte address 0x4 - core index']
  #allocation1 [shape = 'u32[144,128]{1,0:T(1,128)}', space=vmem, size = 0x12000, scoped, tag = 'internal scratch']
  #allocation2 [shape = 'f32[1,1]{1,0:T(1,128)S(1)}', space=vmem, size = 0x200, scoped, tag = 'scoped memory for tpu_custom_call.1']
  %s0 = inlined_call_operand.hbm [shape: bf16[64,128], index: 0, kind: input, shape index: {}]
  %s1 = inlined_call_operand.hbm [shape: bf16[128,512], index: 1, kind: input, shape index: {}]
  %s2 = inlined_call_operand.hbm [shape: f32[1,512], index: 2, kind: input, shape index: {}]
  %s3 = inlined_call_operand.hbm [shape: f32[1,512], index: 3, kind: input, shape index: {}]
  %s4 = inlined_call_operand.<no memory space> [shape: f32[1,1], index: 4, kind: input, shape index: {}]
  %s5 = inlined_call_operand.hbm [shape: f32[64,1], index: 5, kind: output, shape index: {}]
  %s6 = sld [smem:[#allocation0]]
  $region69: #{tpu_custom_call.1} parent=0
    _
  %s8 = ssub.s32 1, %s6
  %s9 = scalar_select 0, %s8, %s6
  %v10 = vstv %s4
  %11 = vst [vmem:[#allocation2] sm:$0x1] %v10
  $region1: #{tpu_custom_call.1} parent=0
    #allocation3 [shape = 'u8[8192]{0}', space=vmem, size = 0x2000, scoped, tag = 'input window, operand 0']
    #allocation4 [shape = 's32[2]{0}', space=sflag, size = 0x8, scoped, tag = 'scoped memory for tpu_custom_call.1']
    #allocation5 [shape = 's32[2]{0}', space=sflag, size = 0x8, scoped, tag = 'scoped memory for tpu_custom_call.1']
    #allocation6 [shape = 'u8[131072]{0}', space=vmem, size = 0x20000, scoped, tag = 'input window, operand 1, single buffered']
    #allocation7 [shape = 's32[1]{0}', space=sflag, size = 0x4, scoped, tag = 'scoped memory for tpu_custom_call.1']
    #allocation8 [shape = 'u8[2048]{0}', space=vmem, size = 0x800, scoped, tag = 'input window, operand 2, single buffered']
    #allocation9 [shape = 'u8[2048]{0}', space=vmem, size = 0x800, scoped, tag = 'input window, operand 3, single buffered']
    #allocation10 [shape = 's32[1]{0}', space=sflag, size = 0x4, scoped, tag = 'scoped memory for tpu_custom_call.1']
    #allocation11 [shape = 'u8[16384]{0}', space=vmem, size = 0x4000, scoped, tag = 'output window, operand 0']
    %12 = vsyncpa [#allocation4], 0
    %s13 = scalar_lea.sflag [#allocation4], 1
    %14 = vsyncpa %s13, 0
    %15 = vsyncpa [#allocation7], 0
    %16 = vsyncpa [#allocation10], 0
    %17 = vsyncpa [#allocation5], 0
    %s18 = scalar_lea.sflag [#allocation5], 1
    %19 = vsyncpa %s18, 0
    loop: start=0, step=1, limit=6
    $region2: #{tpu_custom_call.1} parent=1 // loop_pre_header
      _
    $region3: #{tpu_custom_call.1} parent=1 // loop_header
      %s21 = sphi 0, %s25
      %p22 = scmp.ge.s32.totalorder %s21, 6
      %s31 = sphi 0, %s33
      %s34 = sphi 0, %s31
      %s35 = sphi 0, %s34
      %s51 = sphi 0, %s35
      %s55 = sphi 0, %s55
      %s57 = sphi 0, %s55
      %s58 = sphi 0, %s57
      %s72 = sphi 0, %s58
      %s76 = sphi 0, %s76
      %s78 = sphi 0, %s76
      %s79 = sphi 0, %s78
      %s93 = sphi 0, %s79
      %s97 = sphi 0, %s97
      %s99 = sphi 0, %s97
      %s100 = sphi 0, %s99
      %s114 = sphi 0, %s100
      %s118 = sphi 0, %s118
      %s120 = sphi 0, %s118
      %s121 = sphi 0, %s120
      %s135 = sphi 0, %s121
      %s141 = sphi 0, %s143
      %s144 = sphi 0, %s141
      %s145 = sphi 0, %s144
      %s161 = sphi 0, %s145
    $region4: #{tpu_custom_call.1} parent=1 // loop_header_branch
      %24 = sbr.rel (%p22) target = $region8
    $region5: #{tpu_custom_call.1} parent=1 // loop_body
      %s26 = ssub.s32 %s21, 1
      %s27 = ssub.s32 %s21, 2
      %s28 = sadd.s32 %s21, 1
      %s29 = ssub.s32 %s21, %s28
      %p30 = scmp.eq.s32.totalorder %s29, 0
      %s32 = sadd.s32 %s31, 1
      %s33 = scalar_select %p30, %s31, %s32
      %p36 = pneg %p30
      %p37 = scmp.eq.s32.totalorder %s21, 3
      %p38 = por %p36, %p37
      %p39 = scmp.ne.s32.totalorder %s31, %s34
      %p40 = scmp.eq.s32.totalorder %s21, 0
      %p41 = por %p39, %p40
      %p42 = scmp.ne.s32.totalorder %s31, %s34
      %p43 = scmp.eq.s32.totalorder %s26, 3
      %p44 = por %p42, %p43
      %p45 = scmp.ne.s32.totalorder %s34, %s35
      %p46 = scmp.eq.s32.totalorder %s26, 0
      %p47 = por %p45, %p46
      %p48 = scmp.ne.s32.totalorder %s34, %s35
      %p49 = scmp.eq.s32.totalorder %s27, 3
      %p50 = por %p48, %p49
      %p52 = scmp.ne.s32.totalorder %s35, %s51
      %p53 = scmp.eq.s32.totalorder %s27, 0
      %p54 = por %p52, %p53
      %s56 = sadd.s32 %s55, 1
      %p59 = scmp.eq.s32.totalorder %s21, 3
      %p60 = scmp.ne.s32.totalorder %s55, %s57
      %p61 = scmp.eq.s32.totalorder %s21, 0
      %p62 = por %p60, %p61
      %p63 = scmp.ne.s32.totalorder %s55, %s57
      %p64 = scmp.eq.s32.totalorder %s26, 3
      %p65 = por %p63, %p64
      %p66 = scmp.ne.s32.totalorder %s57, %s58
      %p67 = scmp.eq.s32.totalorder %s26, 0
      %p68 = por %p66, %p67
      %p69 = scmp.ne.s32.totalorder %s57, %s58
      %p70 = scmp.eq.s32.totalorder %s27, 3
      %p71 = por %p69, %p70
      %p73 = scmp.ne.s32.totalorder %s58, %s72
      %p74 = scmp.eq.s32.totalorder %s27, 0
      %p75 = por %p73, %p74
      %s77 = sadd.s32 %s76, 1
      %p80 = scmp.eq.s32.totalorder %s21, 3
      %p81 = scmp.ne.s32.totalorder %s76, %s78
      %p82 = scmp.eq.s32.totalorder %s21, 0
      %p83 = por %p81, %p82
      %p84 = scmp.ne.s32.totalorder %s76, %s78
      %p85 = scmp.eq.s32.totalorder %s26, 3
      %p86 = por %p84, %p85
      %p87 = scmp.ne.s32.totalorder %s78, %s79
      %p88 = scmp.eq.s32.totalorder %s26, 0
      %p89 = por %p87, %p88
      %p90 = scmp.ne.s32.totalorder %s78, %s79
      %p91 = scmp.eq.s32.totalorder %s27, 3
      %p92 = por %p90, %p91
      %p94 = scmp.ne.s32.totalorder %s79, %s93
      %p95 = scmp.eq.s32.totalorder %s27, 0
      %p96 = por %p94, %p95
      %s98 = sadd.s32 %s97, 1
      %p101 = scmp.eq.s32.totalorder %s21, 3
      %p102 = scmp.ne.s32.totalorder %s97, %s99
      %p103 = scmp.eq.s32.totalorder %s21, 0
      %p104 = por %p102, %p103
      %p105 = scmp.ne.s32.totalorder %s97, %s99
      %p106 = scmp.eq.s32.totalorder %s26, 3
      %p107 = por %p105, %p106
      %p108 = scmp.ne.s32.totalorder %s99, %s100
      %p109 = scmp.eq.s32.totalorder %s26, 0
      %p110 = por %p108, %p109
      %p111 = scmp.ne.s32.totalorder %s99, %s100
      %p112 = scmp.eq.s32.totalorder %s27, 3
      %p113 = por %p111, %p112
      %p115 = scmp.ne.s32.totalorder %s100, %s114
      %p116 = scmp.eq.s32.totalorder %s27, 0
      %p117 = por %p115, %p116
      %s119 = sadd.s32 %s118, 1
      %p122 = scmp.eq.s32.totalorder %s21, 3
      %p123 = scmp.ne.s32.totalorder %s118, %s120
      %p124 = scmp.eq.s32.totalorder %s21, 0
      %p125 = por %p123, %p124
      %p126 = scmp.ne.s32.totalorder %s118, %s120
      %p127 = scmp.eq.s32.totalorder %s26, 3
      %p128 = por %p126, %p127
      %p129 = scmp.ne.s32.totalorder %s120, %s121
      %p130 = scmp.eq.s32.totalorder %s26, 0
      %p131 = por %p129, %p130
      %p132 = scmp.ne.s32.totalorder %s120, %s121
      %p133 = scmp.eq.s32.totalorder %s27, 3
      %p134 = por %p132, %p133
      %p136 = scmp.ne.s32.totalorder %s121, %s135
      %p137 = scmp.eq.s32.totalorder %s27, 0
      %p138 = por %p136, %p137
      %s139 = ssub.s32 %s21, %s28
      %p140 = scmp.eq.s32.totalorder %s139, 0
      %s142 = sadd.s32 %s141, 1
      %s143 = scalar_select %p140, %s141, %s142
      %p146 = pneg %p140
      %p147 = scmp.eq.s32.totalorder %s21, 3
      %p148 = por %p146, %p147
      %p149 = scmp.ne.s32.totalorder %s141, %s144
      %p150 = scmp.eq.s32.totalorder %s21, 0
      %p151 = por %p149, %p150
      %p152 = scmp.ne.s32.totalorder %s141, %s144
      %p153 = scmp.eq.s32.totalorder %s26, 3
      %p154 = por %p152, %p153
      %p155 = scmp.ne.s32.totalorder %s144, %s145
      %p156 = scmp.eq.s32.totalorder %s26, 0
      %p157 = por %p155, %p156
      %p158 = scmp.ne.s32.totalorder %s144, %s145
      %p159 = scmp.eq.s32.totalorder %s27, 3
      %p160 = por %p158, %p159
      %p162 = scmp.ne.s32.totalorder %s145, %s161
      %p163 = scmp.eq.s32.totalorder %s27, 0
      %p164 = por %p162, %p163
      %p165 = scmp.le.s32.totalorder 1, %s21
      %p166 = scmp.lt.s32.totalorder %s21, 5
      %p167 = pnand %p165, %p166
      %p168 = pneg %p167
      // Predicated region
      $region9: #{tpu_custom_call.1} parent=5 // pred_check
        _
      $region10: #{tpu_custom_call.1} parent=5 // pred_check_branch
        %170 = sbr.rel (%p167) target = $region12
      $region11: #{tpu_custom_call.1} parent=5 // pred_region
        %s171 = ssub.s32 %s21, 1
        // Predicated region
        $region13: #{tpu_custom_call.1} parent=11 // pred_check
          %p172 = pneg %p68
        $region14: #{tpu_custom_call.1} parent=11 // pred_check_branch
          %174 = sbr.rel (%p172) target = $region16
        $region15: #{tpu_custom_call.1} parent=11 // pred_region
          %s176 = ssub.s32 4096, 4096
          %177 = vsyncadd [#allocation7], %s176
          %s178 = sshll.u32 [#allocation6], 4
          %s179 = int_to_ptr.vmem [resolvable:$true] %s178
          %184 = dma.hbm_to_vmem [thread:$0]  %s1, 4096, %s179, [#allocation7], 256, 256, 16
        $region16: #{tpu_custom_call.1} parent=11 // pred_fallthru
          _
        // Predicated region
        $region17: #{tpu_custom_call.1} parent=11 // pred_check
          %p185 = pneg %p89
        $region18: #{tpu_custom_call.1} parent=11 // pred_check_branch
          %187 = sbr.rel (%p185) target = $region20
        $region19: #{tpu_custom_call.1} parent=11 // pred_region
          %s189 = ssub.s32 64, 64
          %190 = vsyncadd [#allocation7], %s189
          %s192 = sshll.u32 [#allocation8], 4
          %s193 = int_to_ptr.vmem [resolvable:$true] %s192
          %195 = dma.hbm_to_vmem [thread:$0]  %s2, 64, %s193, [#allocation7]
        $region20: #{tpu_custom_call.1} parent=11 // pred_fallthru
          _
        // Predicated region
        $region21: #{tpu_custom_call.1} parent=11 // pred_check
          %p196 = pneg %p110
        $region22: #{tpu_custom_call.1} parent=11 // pred_check_branch
          %198 = sbr.rel (%p196) target = $region24
        $region23: #{tpu_custom_call.1} parent=11 // pred_region
          %s200 = ssub.s32 64, 64
          %201 = vsyncadd [#allocation10], %s200
          %s203 = sshll.u32 [#allocation9], 4
          %s204 = int_to_ptr.vmem [resolvable:$true] %s203
          %206 = dma.hbm_to_vmem [thread:$0]  %s3, 64, %s204, [#allocation10]
        $region24: #{tpu_custom_call.1} parent=11 // pred_fallthru
          _
        // Predicated region
        $region25: #{tpu_custom_call.1} parent=11 // pred_check
          %p207 = pneg %p131
        $region26: #{tpu_custom_call.1} parent=11 // pred_check_branch
          %209 = sbr.rel (%p207) target = $region28
        $region27: #{tpu_custom_call.1} parent=11 // pred_region
          _
        $region28: #{tpu_custom_call.1} parent=11 // pred_fallthru
          _
      $region12: #{tpu_custom_call.1} parent=5 // pred_fallthru
        _
      %p210 = scmp.lt.s32.totalorder %s21, 4
      // Predicated region
      $region29: #{tpu_custom_call.1} parent=5 // pred_check
        %p211 = pneg %p210
      $region30: #{tpu_custom_call.1} parent=5 // pred_check_branch
        %213 = sbr.rel (%p211) target = $region32
      $region31: #{tpu_custom_call.1} parent=5 // pred_region
        // Predicated region
        $region33: #{tpu_custom_call.1} parent=31 // pred_check
          %p214 = pneg %p41
        $region34: #{tpu_custom_call.1} parent=31 // pred_check_branch
          %216 = sbr.rel (%p214) target = $region36
        $region35: #{tpu_custom_call.1} parent=31 // pred_region
          %s217 = sand.u32 %s31, 1
          %s218 = scalar_lea.sflag [#allocation4], %s217
          %s219 = sand.u32 %s31, 1
          %s220 = smul.addr %s219, 8
          %s221 = scalar_lea.vmem [#allocation3], %s220
          %s222 = smul.u32 2, %s21
          %s224 = ssub.s32 128, 128
          %225 = vsyncadd %s218, %s224
          %s226 = smul.addr %s222, 64
          %s227 = scalar_lea.hbm %s0, %s226
          %s228 = sshll.u32 %s221, 4
          %s229 = int_to_ptr.vmem [resolvable:$true] %s228
          %234 = dma.hbm_to_vmem [thread:$0]  %s227, 128, %s229, %s218, 64, 64, 4
        $region36: #{tpu_custom_call.1} parent=31 // pred_fallthru
          _
      $region32: #{tpu_custom_call.1} parent=5 // pred_fallthru
        _
      %p235 = scmp.le.s32.totalorder 1, %s21
      %p236 = scmp.lt.s32.totalorder %s21, 5
      %p237 = pnand %p235, %p236
      %p238 = pneg %p237
      // Predicated region
      $region37: #{tpu_custom_call.1} parent=5 // pred_check
        _
      $region38: #{tpu_custom_call.1} parent=5 // pred_check_branch
        %240 = sbr.rel (%p237) target = $region40
      $region39: #{tpu_custom_call.1} parent=5 // pred_region
        %s241 = ssub.s32 %s21, 1
        %s242 = sand.u32 %s34, 1
        %s243 = scalar_lea.sflag [#allocation4], %s242
        %s244 = sand.u32 %s34, 1
        %s245 = smul.addr %s244, 8
        %s246 = scalar_lea.vmem [#allocation3], %s245
        // Predicated region
        $region41: #{tpu_custom_call.1} parent=39 // pred_check
          %p247 = pneg %p47
        $region42: #{tpu_custom_call.1} parent=39 // pred_check_branch
          %249 = sbr.rel (%p247) target = $region44
        $region43: #{tpu_custom_call.1} parent=39 // pred_region
          %250 = dma.done %s243, 128
        $region44: #{tpu_custom_call.1} parent=39 // pred_fallthru
          _
        // Predicated region
        $region45: #{tpu_custom_call.1} parent=39 // pred_check
          %p251 = pneg %p68
        $region46: #{tpu_custom_call.1} parent=39 // pred_check_branch
          %253 = sbr.rel (%p251) target = $region48
        $region47: #{tpu_custom_call.1} parent=39 // pred_region
          %254 = dma.done [#allocation7], 4096
        $region48: #{tpu_custom_call.1} parent=39 // pred_fallthru
          _
        // Predicated region
        $region49: #{tpu_custom_call.1} parent=39 // pred_check
          %p255 = pneg %p89
        $region50: #{tpu_custom_call.1} parent=39 // pred_check_branch
          %257 = sbr.rel (%p255) target = $region52
        $region51: #{tpu_custom_call.1} parent=39 // pred_region
          %258 = dma.done [#allocation7], 64
        $region52: #{tpu_custom_call.1} parent=39 // pred_fallthru
          _
        // Predicated region
        $region53: #{tpu_custom_call.1} parent=39 // pred_check
          %p259 = pneg %p110
        $region54: #{tpu_custom_call.1} parent=39 // pred_check_branch
          %261 = sbr.rel (%p259) target = $region56
        $region55: #{tpu_custom_call.1} parent=39 // pred_region
          %262 = dma.done [#allocation10], 64
        $region56: #{tpu_custom_call.1} parent=39 // pred_fallthru
          _
        %s263 = sand.u32 %s34, 1
        %s264 = scalar_lea.sflag [#allocation4], %s263
        %s265 = sand.u32 %s34, 1
        %s266 = smul.addr %s265, 8
        %s267 = scalar_lea.vmem [#allocation3], %s266
        %p268 = pneg %p47
        %p269 = pneg %p44
        %p270 = pneg %p68
        %p271 = pneg %p65
        %p272 = pneg %p89
        %p273 = pneg %p86
        %p274 = pneg %p110
        %p275 = pneg %p107
        %p276 = pneg %p131
        %p277 = pneg %p128
        %p278 = pneg %p157
        %p279 = pneg %p154
        %s280 = sand.u32 %s144, 1
        %s281 = scalar_lea.sflag [#allocation5], %s280
        %s282 = sand.u32 %s144, 1
        %s283 = smul.addr %s282, 16
        %s284 = scalar_lea.vmem [#allocation11], %s283
        %s285 = smul.u32 2, %s26
        %s286 = smul.u32 2, %s26
        %v288 = vld [vmem:[%s246] sm:$0xf]
        %v289 = vld [vmem:[%s246 + $0x4] sm:$0xf]
        %v290 = vld [vmem:[#allocation6] sm:$0xff]
        %v291 = vld [vmem:[#allocation6 + $0x8] sm:$0xff]
        %v292 = vld [vmem:[#allocation6 + $0x10] sm:$0xff]
        %v293 = vld [vmem:[#allocation6 + $0x18] sm:$0xff]
        %v294 = vld [vmem:[#allocation6 + $0x20] sm:$0xff]
        %v295 = vld [vmem:[#allocation6 + $0x28] sm:$0xff]
        %v296 = vld [vmem:[#allocation6 + $0x30] sm:$0xff]
        %v297 = vld [vmem:[#allocation6 + $0x38] sm:$0xff]
        %v298 = vld [vmem:[#allocation6 + $0x40] sm:$0xff]
        %v299 = vld [vmem:[#allocation6 + $0x48] sm:$0xff]
        %v300 = vld [vmem:[#allocation6 + $0x50] sm:$0xff]
        %v301 = vld [vmem:[#allocation6 + $0x58] sm:$0xff]
        %v302 = vld [vmem:[#allocation6 + $0x60] sm:$0xff]
        %v303 = vld [vmem:[#allocation6 + $0x68] sm:$0xff]
        %v304 = vld [vmem:[#allocation6 + $0x70] sm:$0xff]
        %v305 = vld [vmem:[#allocation6 + $0x78] sm:$0xff]
        %v306 = vld [vmem:[#allocation6 + $0x80] sm:$0xff]
        %v307 = vld [vmem:[#allocation6 + $0x88] sm:$0xff]
        %v308 = vld [vmem:[#allocation6 + $0x90] sm:$0xff]
        %v309 = vld [vmem:[#allocation6 + $0x98] sm:$0xff]
        %v310 = vld [vmem:[#allocation6 + $0xa0] sm:$0xff]
        %v311 = vld [vmem:[#allocation6 + $0xa8] sm:$0xff]
        %v312 = vld [vmem:[#allocation6 + $0xb0] sm:$0xff]
        %v313 = vld [vmem:[#allocation6 + $0xb8] sm:$0xff]
        %v314 = vld [vmem:[#allocation6 + $0xc0] sm:$0xff]
        %v315 = vld [vmem:[#allocation6 + $0xc8] sm:$0xff]
        %v316 = vld [vmem:[#allocation6 + $0xd0] sm:$0xff]
        %v317 = vld [vmem:[#allocation6 + $0xd8] sm:$0xff]
        %v318 = vld [vmem:[#allocation6 + $0xe0] sm:$0xff]
        %v319 = vld [vmem:[#allocation6 + $0xe8] sm:$0xff]
        %v320 = vld [vmem:[#allocation6 + $0xf0] sm:$0xff]
        %v321 = vld [vmem:[#allocation6 + $0xf8] sm:$0xff]
        %v322 = vld [vmem:[#allocation8] sm:$0xf]
        %v324 = vlaneseq
        %v325 = vshrl.u32 %v324, 7
        %v326 = vsub.s32 0, %v325
        %v327 = vrot.slane %v322, %v326
        %v328 = vlaneseq
        %v329 = vshrl.u32 %v328, 7
        %v330 = vsub.s32 1, %v329
        %v331 = vrot.slane %v322, %v330
        %v332 = vlaneseq
        %v333 = vshrl.u32 %v332, 7
        %v334 = vsub.s32 2, %v333
        %v335 = vrot.slane %v322, %v334
        %v336 = vlaneseq
        %v337 = vshrl.u32 %v336, 7
        %v338 = vsub.s32 3, %v337
        %v339 = vrot.slane %v322, %v338
        %v346 = vunpack.c.l.b16 %v288
        %v347 = vunpack.c.l.b16 %v289
        %v348 = vpack.c.b16 %v347, %v346
        %v382 = vunpack.c.l.b16 %v290
        %v383 = vunpack.c.h.b16 %v290
        %v384 = vunpack.c.l.b16 %v291
        %v385 = vunpack.c.h.b16 %v291
        %v386 = vunpack.c.l.b16 %v292
        %v387 = vunpack.c.h.b16 %v292
        %v388 = vunpack.c.l.b16 %v293
        %v389 = vunpack.c.h.b16 %v293
        %v390 = vunpack.c.l.b16 %v294
        %v391 = vunpack.c.h.b16 %v294
        %v392 = vunpack.c.l.b16 %v295
        %v393 = vunpack.c.h.b16 %v295
        %v394 = vunpack.c.l.b16 %v296
        %v395 = vunpack.c.h.b16 %v296
        %v396 = vunpack.c.l.b16 %v297
        %v397 = vunpack.c.h.b16 %v297
        %v398 = vunpack.c.l.b16 %v298
        %v399 = vunpack.c.h.b16 %v298
        %v400 = vunpack.c.l.b16 %v299
        %v401 = vunpack.c.h.b16 %v299
        %v402 = vunpack.c.l.b16 %v300
        %v403 = vunpack.c.h.b16 %v300
        %v404 = vunpack.c.l.b16 %v301
        %v405 = vunpack.c.h.b16 %v301
        %v406 = vunpack.c.l.b16 %v302
        %v407 = vunpack.c.h.b16 %v302
        %v408 = vunpack.c.l.b16 %v303
        %v409 = vunpack.c.h.b16 %v303
        %v410 = vunpack.c.l.b16 %v304
        %v411 = vunpack.c.h.b16 %v304
        %v412 = vunpack.c.l.b16 %v305
        %v413 = vunpack.c.h.b16 %v305
        %v414 = vunpack.c.l.b16 %v306
        %v415 = vunpack.c.h.b16 %v306
        %v416 = vunpack.c.l.b16 %v307
        %v417 = vunpack.c.h.b16 %v307
        %v418 = vunpack.c.l.b16 %v308
        %v419 = vunpack.c.h.b16 %v308
        %v420 = vunpack.c.l.b16 %v309
        %v421 = vunpack.c.h.b16 %v309
        %v422 = vunpack.c.l.b16 %v310
        %v423 = vunpack.c.h.b16 %v310
        %v424 = vunpack.c.l.b16 %v311
        %v425 = vunpack.c.h.b16 %v311
        %v426 = vunpack.c.l.b16 %v312
        %v427 = vunpack.c.h.b16 %v312
        %v428 = vunpack.c.l.b16 %v313
        %v429 = vunpack.c.h.b16 %v313
        %v430 = vunpack.c.l.b16 %v314
        %v431 = vunpack.c.h.b16 %v314
        %v432 = vunpack.c.l.b16 %v315
        %v433 = vunpack.c.h.b16 %v315
        %v434 = vunpack.c.l.b16 %v316
        %v435 = vunpack.c.h.b16 %v316
        %v436 = vunpack.c.l.b16 %v317
        %v437 = vunpack.c.h.b16 %v317
        %v438 = vunpack.c.l.b16 %v318
        %v439 = vunpack.c.h.b16 %v318
        %v440 = vunpack.c.l.b16 %v319
        %v441 = vunpack.c.h.b16 %v319
        %v442 = vunpack.c.l.b16 %v320
        %v443 = vunpack.c.h.b16 %v320
        %v444 = vunpack.c.l.b16 %v321
        %v445 = vunpack.c.h.b16 %v321
        %v446 = vpack.c.b16 %v386, %v382
        %v447 = vpack.c.b16 %v387, %v383
        %v448 = vpack.c.b16 %v388, %v384
        %v449 = vpack.c.b16 %v389, %v385
        %v450 = vpack.c.b16 %v394, %v390
        %v451 = vpack.c.b16 %v395, %v391
        %v452 = vpack.c.b16 %v396, %v392
        %v453 = vpack.c.b16 %v397, %v393
        %v454 = vpack.c.b16 %v402, %v398
        %v455 = vpack.c.b16 %v403, %v399
        %v456 = vpack.c.b16 %v404, %v400
        %v457 = vpack.c.b16 %v405, %v401
        %v458 = vpack.c.b16 %v410, %v406
        %v459 = vpack.c.b16 %v411, %v407
        %v460 = vpack.c.b16 %v412, %v408
        %v461 = vpack.c.b16 %v413, %v409
        %v462 = vpack.c.b16 %v418, %v414
        %v463 = vpack.c.b16 %v419, %v415
        %v464 = vpack.c.b16 %v420, %v416
        %v465 = vpack.c.b16 %v421, %v417
        %v466 = vpack.c.b16 %v426, %v422
        %v467 = vpack.c.b16 %v427, %v423
        %v468 = vpack.c.b16 %v428, %v424
        %v469 = vpack.c.b16 %v429, %v425
        %v470 = vpack.c.b16 %v434, %v430
        %v471 = vpack.c.b16 %v435, %v431
        %v472 = vpack.c.b16 %v436, %v432
        %v473 = vpack.c.b16 %v437, %v433
        %v474 = vpack.c.b16 %v442, %v438
        %v475 = vpack.c.b16 %v443, %v439
        %v476 = vpack.c.b16 %v444, %v440
        %v477 = vpack.c.b16 %v445, %v441
        %510 = vmatprep.subr.bf16.mxu0 %v447
        %511 = vmatpush1.bf16.msra.mxu0 %v446
        %512 = vmatprep.subr.bf16.mxu0 %v451
        %513 = vmatpush1.bf16.msra.mxu0 %v450
        %514 = vmatprep.subr.bf16.mxu0 %v455
        %515 = vmatpush1.bf16.msra.mxu0 %v454
        %516 = vmatprep.subr.bf16.mxu0 %v459
        %517 = vmatpush1.bf16.msra.mxu0 %v458
        %518 = vmatprep.subr.bf16.mxu0 %v463
        %519 = vmatpush1.bf16.msra.mxu0 %v462
        %520 = vmatprep.subr.bf16.mxu0 %v467
        %521 = vmatpush1.bf16.msra.mxu0 %v466
        %522 = vmatprep.subr.bf16.mxu0 %v471
        %523 = vmatpush1.bf16.msra.mxu0 %v470
        %524 = vmatprep.subr.bf16.mxu0 %v475
        %525 = vmatpush1.bf16.msra.mxu0 %v474
        %526 = vmatprep.subr.bf16.mxu0 0
        %527 = vmatpush1.bf16.msra.mxu0 0
        %528 = vmatprep.subr.bf16.mxu0 0
        %529 = vmatpush1.bf16.msra.mxu0 0
        %530 = vmatprep.subr.bf16.mxu0 0
        %531 = vmatpush1.bf16.msra.mxu0 0
        %532 = vmatprep.subr.bf16.mxu0 0
        %533 = vmatpush1.bf16.msra.mxu0 0
        %534 = vmatprep.subr.bf16.mxu0 0
        %535 = vmatpush1.bf16.msra.mxu0 0
        %536 = vmatprep.subr.bf16.mxu0 0
        %537 = vmatpush1.bf16.msra.mxu0 0
        %538 = vmatprep.subr.bf16.mxu0 0
        %539 = vmatpush1.bf16.msra.mxu0 0
        %540 = vmatprep.subr.bf16.mxu0 0
        %541 = vmatpush1.bf16.msra.mxu0 0
        %542 = vmatprep.mubr.bf16.mxu0 0
        %543 = vmatmul.mubr.bf16.gmra.mrb[0].mxu0 %v348
        %v544 = vpop.f32.mrb[0].mxu0
        %v545 = vadd.f32 %v327, %v544
        %v546 = vpop.f32.mrb[0].mxu0
        %v547 = vadd.f32 %v331, %v546
        %v548 = vpop.f32.mrb[0].mxu0
        %v549 = vadd.f32 %v327, %v548
        %v550 = vpop.f32.mrb[0].mxu0
        %v551 = vadd.f32 %v331, %v550
        %552 = vdwg.mxu0
        %553 = vmatprep.subr.bf16.mxu0 %v449
        %554 = vmatpush1.bf16.msra.mxu0 %v448
        %555 = vmatprep.subr.bf16.mxu0 %v453
        %556 = vmatpush1.bf16.msra.mxu0 %v452
        %557 = vmatprep.subr.bf16.mxu0 %v457
        %558 = vmatpush1.bf16.msra.mxu0 %v456
        %559 = vmatprep.subr.bf16.mxu0 %v461
        %560 = vmatpush1.bf16.msra.mxu0 %v460
        %561 = vmatprep.subr.bf16.mxu0 %v465
        %562 = vmatpush1.bf16.msra.mxu0 %v464
        %563 = vmatprep.subr.bf16.mxu0 %v469
        %564 = vmatpush1.bf16.msra.mxu0 %v468
        %565 = vmatprep.subr.bf16.mxu0 %v473
        %566 = vmatpush1.bf16.msra.mxu0 %v472
        %567 = vmatprep.subr.bf16.mxu0 %v477
        %568 = vmatpush1.bf16.msra.mxu0 %v476
        %569 = vmatprep.subr.bf16.mxu0 0
        %570 = vmatpush1.bf16.msra.mxu0 0
        %571 = vmatprep.subr.bf16.mxu0 0
        %572 = vmatpush1.bf16.msra.mxu0 0
        %573 = vmatprep.subr.bf16.mxu0 0
        %574 = vmatpush1.bf16.msra.mxu0 0
        %575 = vmatprep.subr.bf16.mxu0 0
        %576 = vmatpush1.bf16.msra.mxu0 0
        %577 = vmatprep.subr.bf16.mxu0 0
        %578 = vmatpush1.bf16.msra.mxu0 0
        %579 = vmatprep.subr.bf16.mxu0 0
        %580 = vmatpush1.bf16.msra.mxu0 0
        %581 = vmatprep.subr.bf16.mxu0 0
        %582 = vmatpush1.bf16.msra.mxu0 0
        %583 = vmatprep.subr.bf16.mxu0 0
        %584 = vmatpush1.bf16.msra.mxu0 0
        %585 = vmatprep.mubr.bf16.mxu0 0
        %586 = vmatmul.mubr.bf16.gmra.mrb[0].mxu0 %v348
        %v587 = vpop.f32.mrb[0].mxu0
        %v588 = vadd.f32 %v335, %v587
        %v589 = vpop.f32.mrb[0].mxu0
        %v590 = vadd.f32 %v339, %v589
        %v591 = vpop.f32.mrb[0].mxu0
        %v592 = vadd.f32 %v335, %v591
        %v593 = vpop.f32.mrb[0].mxu0
        %v594 = vadd.f32 %v339, %v593
        %595 = vdwg.mxu0
        %v596 = vxor.u32 %v545, 2147483648
        %v597 = vxor.u32 %v547, 2147483648
        %v598 = vxor.u32 %v588, 2147483648
        %v599 = vxor.u32 %v590, 2147483648
        %v600 = vxor.u32 %v549, 2147483648
        %v601 = vxor.u32 %v551, 2147483648
        %v602 = vxor.u32 %v592, 2147483648
        %v603 = vxor.u32 %v594, 2147483648
        %v604 = vmul.f32 %v596, 1.442695
        %v605 = vpow.pop %v604
        %v606 = vmul.f32 %v597, 1.442695
        %v607 = vpow.pop %v606
        %v608 = vmul.f32 %v598, 1.442695
        %v609 = vpow.pop %v608
        %v610 = vmul.f32 %v599, 1.442695
        %v611 = vpow.pop %v610
        %v612 = vmul.f32 %v600, 1.442695
        %v613 = vpow.pop %v612
        %v614 = vmul.f32 %v601, 1.442695
        %v615 = vpow.pop %v614
        %v616 = vmul.f32 %v602, 1.442695
        %v617 = vpow.pop %v616
        %v618 = vmul.f32 %v603, 1.442695
        %v619 = vpow.pop %v618
        %v620 = vadd.f32 %v605, 1.0
        %v621 = vadd.f32 %v607, 1.0
        %v622 = vadd.f32 %v609, 1.0
        %v623 = vadd.f32 %v611, 1.0
        %v624 = vadd.f32 %v613, 1.0
        %v625 = vadd.f32 %v615, 1.0
        %v626 = vadd.f32 %v617, 1.0
        %v627 = vadd.f32 %v619, 1.0
        %v628 = vrcp.pop %v620
        %v629 = vmul.f32 1.0, %v628
        %v630 = vrcp.pop %v621
        %v631 = vmul.f32 1.0, %v630
        %v632 = vrcp.pop %v622
        %v633 = vmul.f32 1.0, %v632
        %v634 = vrcp.pop %v623
        %v635 = vmul.f32 1.0, %v634
        %v636 = vrcp.pop %v624
        %v637 = vmul.f32 1.0, %v636
        %v638 = vrcp.pop %v625
        %v639 = vmul.f32 1.0, %v638
        %v640 = vrcp.pop %v626
        %v641 = vmul.f32 1.0, %v640
        %v642 = vrcp.pop %v627
        %v643 = vmul.f32 1.0, %v642
        %v644 = vmul.f32 %v545, %v629
        %v645 = vmul.f32 %v547, %v631
        %v646 = vmul.f32 %v588, %v633
        %v647 = vmul.f32 %v590, %v635
        %v648 = vmul.f32 %v549, %v637
        %v649 = vmul.f32 %v551, %v639
        %v650 = vmul.f32 %v592, %v641
        %v651 = vmul.f32 %v594, %v643
        %v652 = vld [vmem:[#allocation9] sm:$0xf]
        %v654 = vlaneseq
        %v655 = vshrl.u32 %v654, 7
        %v656 = vsub.s32 0, %v655
        %v657 = vrot.slane %v652, %v656
        %v658 = vlaneseq
        %v659 = vshrl.u32 %v658, 7
        %v660 = vsub.s32 1, %v659
        %v661 = vrot.slane %v652, %v660
        %v662 = vlaneseq
        %v663 = vshrl.u32 %v662, 7
        %v664 = vsub.s32 2, %v663
        %v665 = vrot.slane %v652, %v664
        %v666 = vlaneseq
        %v667 = vshrl.u32 %v666, 7
        %v668 = vsub.s32 3, %v667
        %v669 = vrot.slane %v652, %v668
        %v674 = vmul.f32 %v644, %v657
        %v675 = vmul.f32 %v645, %v661
        %v676 = vmul.f32 %v646, %v665
        %v677 = vmul.f32 %v647, %v669
        %v678 = vmul.f32 %v648, %v657
        %v679 = vmul.f32 %v649, %v661
        %v680 = vmul.f32 %v650, %v665
        %v681 = vmul.f32 %v651, %v669
        %v682 = vadd.f32 %v674, %v675
        %v683 = vadd.f32 %v682, %v676
        %v684 = vadd.f32 %v683, %v677
        %685 = vadd.xlane.f32.xlu0 %v684
        %v686 = vpop.xlane.xlu0 %685
        %v687 = vadd.f32 %v678, %v679
        %v688 = vadd.f32 %v687, %v680
        %v689 = vadd.f32 %v688, %v681
        %690 = vadd.xlane.f32.xlu0 %v689
        %v691 = vpop.xlane.xlu0 %690
        %v692 = vld [vmem:[#allocation2] sm:$0x1]
        %v694 = vlaneseq
        %v695 = vshrl.u32 %v694, 7
        %v696 = vsub.s32 0, %v695
        %v697 = vrot.slane %v692, %v696
        %v699 = vadd.f32 %v686, %v697
        %v700 = vadd.f32 %v691, %v697
        %vm701 = vcmask 7168
        %702 = vst.msk [vmem:[%s284] sm:$0xff] %vm701, %v699
        %703 = vst.msk [vmem:[%s284 + $0x8] sm:$0xff] %vm701, %v700
        %s704 = sand.u32 %s144, 1
        %s705 = scalar_lea.sflag [#allocation5], %s704
        %s706 = sand.u32 %s144, 1
        %s707 = smul.addr %s706, 16
        %s708 = scalar_lea.vmem [#allocation11], %s707
        // Predicated region
        $region57: #{tpu_custom_call.1} parent=39 // pred_check
          %p709 = pneg %p154
        $region58: #{tpu_custom_call.1} parent=39 // pred_check_branch
          %711 = sbr.rel (%p709) target = $region60
        $region59: #{tpu_custom_call.1} parent=39 // pred_region
          %s712 = smul.u32 2, %s26
          %s714 = ssub.s32 256, 256
          %715 = vsyncadd %s705, %s714
          %s716 = smul.addr %s712, 128
          %s717 = scalar_lea.hbm %s5, %s716
          %s718 = sshll.u32 %s708, 4
          %s719 = int_to_ptr.vmem [resolvable:$true] %s718
          %724 = dma.vmem_to_hbm [thread:$0]  %s719, 256, %s717, %s705, 128, 128, 8
        $region60: #{tpu_custom_call.1} parent=39 // pred_fallthru
          _
      $region40: #{tpu_custom_call.1} parent=5 // pred_fallthru
        _
      %p725 = scmp.le.s32.totalorder 2, %s21
      // Predicated region
      $region61: #{tpu_custom_call.1} parent=5 // pred_check
        %p726 = pneg %p725
      $region62: #{tpu_custom_call.1} parent=5 // pred_check_branch
        %728 = sbr.rel (%p726) target = $region64
      $region63: #{tpu_custom_call.1} parent=5 // pred_region
        %s729 = ssub.s32 %s21, 2
        // Predicated region
        $region65: #{tpu_custom_call.1} parent=63 // pred_check
          %p730 = pneg %p160
        $region66: #{tpu_custom_call.1} parent=63 // pred_check_branch
          %732 = sbr.rel (%p730) target = $region68
        $region67: #{tpu_custom_call.1} parent=63 // pred_region
          %s733 = sand.u32 %s145, 1
          %s734 = scalar_lea.sflag [#allocation5], %s733
          %s735 = sand.u32 %s145, 1
          %s736 = smul.addr %s735, 16
          %s737 = scalar_lea.vmem [#allocation11], %s736
          %738 = dma.done %s734, 256
        $region68: #{tpu_custom_call.1} parent=63 // pred_fallthru
          _
      $region64: #{tpu_custom_call.1} parent=5 // pred_fallthru
        _
    $region6: #{tpu_custom_call.1} parent=1 // loop_footer
      %s25 = sadd.s32 1, %s21
    $region7: #{tpu_custom_call.1} parent=1 // loop_footer_branch
      %20 = sbr.rel target = $region3
    $region8: #{tpu_custom_call.1} parent=1 // loop_exit
      _
    %739 = vsyncpa [#allocation4], 1
    %s740 = scalar_lea.sflag [#allocation4], 1
    %741 = vsyncpa %s740, 1
    %742 = vsyncpa [#allocation7], 1
    %743 = vsyncpa [#allocation10], 1
    %744 = vsyncpa [#allocation5], 1
    %s745 = scalar_lea.sflag [#allocation5], 1
    %746 = vsyncpa %s745, 1

</llo_original>
